<compile_context>
chip_gen: v6e
topology: v6e:2x2x1
jax: 0.10.0
libtpu: 0.0.40
codegen_flags: <defaults>
</compile_context>

<pallas_src>
import functools

import numpy as np
import jax
import jax.numpy as jnp
from jax.experimental import pallas as pl
from jax.experimental.pallas import tpu as pltpu

EPS = 1e-5


# ---------------------------------------------------------------------------
# One-time parameter preparation (runs once at param-load time, NOT per call):
# BN folding + banded conv weights + GAP-folded dense weights.
# ---------------------------------------------------------------------------

def fold_bn(bias, gamma, beta, running_mean, running_var, eps=EPS):
    scale = gamma / jnp.sqrt(running_var + eps)
    shift = (bias - running_mean) * scale + beta
    return scale, shift


def build_conv1_weights(w_oihw, scale, wsp):
    """conv1 (3x3, 'same') as ONE banded matmul over the tap-concatenated
    (h, [row_kh0 | row_kh1 | row_kh2]) layout -> RHS (3*(wsp+2)*cin, wsp*cout).

    Output columns are permuted to (w parity, w//2, cout) so the 2x2 max-pool over
    width becomes a lane-half max.  The BN scale is folded into the weights.
    """
    cout, cin, nkh, nkw = w_oihw.shape
    wp = wsp + 2
    ws = (w_oihw * scale[:, None, None, None]).astype(jnp.float32)   # (o, c, kh, kw)
    sel = np.zeros((nkw, wp, wsp), np.float32)   # sel[kw, q, w]: padded col q feeds out w
    for kw in range(nkw):
        for w in range(wsp):
            sel[kw, w + kw, w] = 1.0
    sel = jnp.asarray(sel)
    mats = []
    for kh in range(nkh):
        t = jnp.einsum("kpw,ock->pcwo", sel, ws[:, :, kh, :])        # (wp, cin, wsp, cout)
        t = t.reshape(wp, cin, wsp // 2, 2, cout)                    # w = 2*wo + dw
        t = jnp.transpose(t, (0, 1, 3, 2, 4))                        # (wp, cin, dw, wo, cout)
        mats.append(t.reshape(wp * cin, wsp * cout))
    return jnp.concatenate(mats, axis=0).astype(jnp.bfloat16)        # (3*wp*cin, wsp*cout)


def build_conv2_weights(w_oihw, scale, wsp):
    """conv2 (3x3, 'same') as ONE matmul pooled @ [W_kh0 | W_kh1 | W_kh2]; the
    per-height-tap row shift is applied after the matmul in the kernel.  Width
    zero-padding contributes nothing so it is simply omitted from the band.
    Returns (wsp*cin, 3*wsp*cout) with the BN scale folded in.
    """
    cout, cin, nkh, nkw = w_oihw.shape
    ws = (w_oihw * scale[:, None, None, None]).astype(jnp.float32)
    sel = np.zeros((nkw, wsp, wsp), np.float32)  # sel[kw, q, w]: pooled col q feeds out w
    for kw in range(nkw):
        for w in range(wsp):
            q = w + kw - 1
            if 0 <= q < wsp:
                sel[kw, q, w] = 1.0
    sel = jnp.asarray(sel)
    mats = []
    for kh in range(nkh):
        t = jnp.einsum("kqw,ock->qcwo", sel, ws[:, :, kh, :])        # (wsp, cin, wsp, cout)
        mats.append(t.reshape(wsp * cin, wsp * cout))
    return jnp.concatenate(mats, axis=1).astype(jnp.bfloat16)        # (wsp*cin, 3*wsp*cout)


def prepare_params(p, h=16, w=16):
    """Fold BN / GAP and build the matmul-ready weights ONCE (hoisted off the per-call path)."""
    f32 = jnp.float32
    c1 = p["w1"].shape[0]
    out_dim = p["wd"].shape[0]
    sc1, sh1 = fold_bn(p["b1"], p["g1"], p["be1"], p["rm1"], p["rv1"])
    sc2, sh2 = fold_bn(p["b2"], p["g2"], p["be2"], p["rm2"], p["rv2"])
    prep = dict(
        w1=build_conv1_weights(p["w1"], sc1, w),                     # (3*(w+2)*cin, w*c1)
        s1=jnp.tile(sh1, w).reshape(1, w * c1).astype(f32),
        w2=build_conv2_weights(p["w2"], sc2, w // 2),                # ((w//2)*c1, 3*(w//2)*c1)
        s2=jnp.tile(sh2, w // 2).reshape(1, (w // 2) * c1).astype(f32),
        # global-average-pool folded into the dense weights (bf16: MXU-native path)
        wd=(jnp.tile(p["wd"].T, (w // 2, 1)) / float((h // 2) * (w // 2))).astype(jnp.bfloat16),
        bd=p["bd"].reshape(1, out_dim).astype(f32),
    )
    return jax.block_until_ready(prep)


# ---------------------------------------------------------------------------
# The fused Pallas kernel (gridless, no scratch: everything stays in vregs/VMEM)
# ---------------------------------------------------------------------------

def _fused_forward_kernel(lhs1_ref, w1_ref, s1_ref, w2_ref, s2_ref, wd_ref, bd_ref,
                          o_ref, *, n_batch, h2):
    f32, bf16 = jnp.float32, jnp.bfloat16
    nrows = n_batch * h2                       # pooled rows for the whole batch

    # conv1 (+ folded BN scale): ALL taps x row-parities x images in ONE MXU matmul.
    # lhs1 rows: [img0 even-h, img1 even-h, ..., img0 odd-h, img1 odd-h] x h2 rows.
    acc1 = jnp.dot(lhs1_ref[...], w1_ref[...], preferred_element_type=f32)   # (2*nrows, W*C1)
    y = jnp.maximum(acc1 + s1_ref[...], 0.0)                                 # BN shift + ReLU

    # nn.max_pool2d 2x2 stride 2: height = even/odd parity halves (sublane-aligned
    # slices); width = lane-half max via an XLU roll (conv1 cols are (w parity, w//2, c1)).
    ym = jnp.maximum(y[0:nrows, :], y[nrows:2 * nrows, :])                   # (nrows, W*C1)
    half = ym.shape[1] // 2
    pooled = jnp.maximum(ym, pltpu.roll(ym, shift=half, axis=1))[:, 0:half]  # (nrows, half) f32

    # conv2 (+ folded BN scale): ONE matmul against the N-stacked taps; the per-height-tap
    # row shift is applied afterwards (shifting the output rows == shifting the input rows).
    p_all = jnp.dot(pooled.astype(bf16), w2_ref[...],
                    preferred_element_type=f32)                              # (nrows, 3*half)
    p_prev = p_all[:, 0:half]               # tap kh=0: wants pooled row t-1 -> shift rows down
    p_mid = p_all[:, half:2 * half]         # tap kh=1: pooled row t
    p_next = p_all[:, 2 * half:3 * half]    # tap kh=2: wants pooled row t+1 -> shift rows up

    zrow = jnp.zeros((1, half), f32)
    sh_dn = jnp.concatenate([zrow, p_prev[0:nrows - 1, :]], axis=0)   # row r <- p_prev[r-1]
    sh_up = jnp.concatenate([p_next[1:nrows, :], zrow], axis=0)       # row r <- p_next[r+1]
    row = jax.lax.broadcasted_iota(jnp.int32, (nrows, half), 0)
    is_first = functools.reduce(jnp.logical_or,
                                [row == i * h2 for i in range(n_batch)])
    is_last = functools.reduce(jnp.logical_or,
                               [row == (i + 1) * h2 - 1 for i in range(n_batch)])
    acc2 = jnp.where(is_first, 0.0, sh_dn) + p_mid + jnp.where(is_last, 0.0, sh_up)

    # BN shift + residual add (max-pool output) + ReLU
    z = jnp.maximum(acc2 + s2_ref[...] + pooled, 0.0)                 # (nrows, half)

    # nn.global_avg_pool2d + nn.batch_flatten: width/channel fold already lives in wd;
    # sum the h2 rows of each image (sublane-aligned slices + sublane reductions).
    zsum = jnp.concatenate(
        [jnp.sum(z[i * h2:(i + 1) * h2, :], axis=0, keepdims=True) for i in range(n_batch)],
        axis=0)                                                       # (n_batch, half)

    # nn.dense + nn.bias_add + sigmoid
    logits = jnp.dot(zsum.astype(bf16), wd_ref[...], preferred_element_type=f32) + bd_ref[...]
    o_ref[...] = jax.nn.sigmoid(logits)


def fused_forward(lhs1, w1, s1, w2, s2, wd, bd, *, n_batch, h2):
    out_dim = wd.shape[1]
    kern = functools.partial(_fused_forward_kernel, n_batch=n_batch, h2=h2)
    vmem = pl.BlockSpec(memory_space=pltpu.MemorySpace.VMEM)
    # TODO(synk): for large-batch throughput, add a leading grid axis over batch blocks
    # with dimension_semantics=("parallel",) (uses v7x's 2nd TensorCore); at batch=2 the
    # batch is folded into the matmul M dimension instead.
    return pl.pallas_call(
        kern,
        out_shape=jax.ShapeDtypeStruct((n_batch, out_dim), jnp.float32),
        in_specs=[vmem] * 7,
        out_specs=vmem,
    )(lhs1, w1, s1, w2, s2, wd, bd)


# ---------------------------------------------------------------------------
# Per-call forward: input layout plumbing + ONE pallas_call
# ---------------------------------------------------------------------------

def forward(x_nchw, prep):
    n, cin, h, w = x_nchw.shape
    h2 = h // 2

    # NCHW -> NHWC, zero-pad spatially, flatten to lane-dense (padded_h, (w+2)*cin)
    x = jnp.transpose(x_nchw, (0, 2, 3, 1))
    xp = jnp.pad(x, ((0, 0), (1, 1), (1, 1), (0, 0))).reshape(n, h + 2, (w + 2) * cin)
    xe = xp[:, 0::2, :]                       # padded rows 0,2,...   (n, h2+1, (w+2)*cin)
    xo = xp[:, 1::2, :]                       # padded rows 1,3,...

    # conv1 LHS slab: concatenate the 3 height-tap windows along the lane (K) axis and
    # stack (row parity, image, pooled row) along M -> one (2*n*h2, 3*(w+2)*cin) operand.
    even = jnp.concatenate([xe[:, 0:h2], xo[:, 0:h2], xe[:, 1:h2 + 1]], axis=-1)
    odd = jnp.concatenate([xo[:, 0:h2], xe[:, 1:h2 + 1], xo[:, 1:h2 + 1]], axis=-1)
    lhs1 = jnp.concatenate([even, odd], axis=0).reshape(2 * n * h2, -1).astype(jnp.bfloat16)

    return fused_forward(lhs1, prep["w1"], prep["s1"], prep["w2"], prep["s2"],
                         prep["wd"], prep["bd"], n_batch=n, h2=h2)


# ---------------------------------------------------------------------------
# Pure-JAX reference (independent path) for a correctness check
# ---------------------------------------------------------------------------

def reference_forward(x_nchw, p):
    x = jnp.transpose(x_nchw, (0, 2, 3, 1))                 # NHWC

    def conv(v, wgt, b):                                    # wgt: OIHW
        w_hwio = jnp.transpose(wgt, (2, 3, 1, 0))
        y = jax.lax.conv_general_dilated(
            v, w_hwio, (1, 1), ((1, 1), (1, 1)),
            dimension_numbers=("NHWC", "HWIO", "NHWC"))
        return y + b

    def bn(v, g, be, rm, rv):
        return (v - rm) / jnp.sqrt(rv + EPS) * g + be

    y = jax.nn.relu(bn(conv(x, p["w1"], p["b1"]), p["g1"], p["be1"], p["rm1"], p["rv1"]))
    y = jax.lax.reduce_window(y, -jnp.inf, jax.lax.max,
                              (1, 2, 2, 1), (1, 2, 2, 1), "VALID")
    z = bn(conv(y, p["w2"], p["b2"]), p["g2"], p["be2"], p["rm2"], p["rv2"])
    z = jax.nn.relu(z + y)
    feat = jnp.mean(z, axis=(1, 2))
    return jax.nn.sigmoid(feat @ p["wd"].T + p["bd"])


# ---------------------------------------------------------------------------
# Deterministic parameter construction + run
# ---------------------------------------------------------------------------

def make_params(key, cin=4, c1=8, out_dim=16):
    ks = jax.random.split(key, 16)
    f32 = jnp.float32
    return dict(
        w1=jax.random.normal(ks[0], (c1, cin, 3, 3), f32) * 0.2,
        b1=jax.random.normal(ks[1], (c1,), f32) * 0.1,
        g1=jax.random.uniform(ks[2], (c1,), f32, 0.5, 1.5),
        be1=jax.random.normal(ks[3], (c1,), f32) * 0.1,
        rm1=jax.random.normal(ks[4], (c1,), f32) * 0.1,
        rv1=jax.random.uniform(ks[5], (c1,), f32, 0.5, 1.5),
        w2=jax.random.normal(ks[6], (c1, c1, 3, 3), f32) * 0.2,
        b2=jax.random.normal(ks[7], (c1,), f32) * 0.1,
        g2=jax.random.uniform(ks[8], (c1,), f32, 0.5, 1.5),
        be2=jax.random.normal(ks[9], (c1,), f32) * 0.1,
        rm2=jax.random.normal(ks[10], (c1,), f32) * 0.1,
        rv2=jax.random.uniform(ks[11], (c1,), f32, 0.5, 1.5),
        wd=jax.random.normal(ks[12], (out_dim, c1), f32) * 0.3,
        bd=jax.random.normal(ks[13], (out_dim,), f32) * 0.1,
    )


if __name__ == "__main__":
    key = jax.random.PRNGKey(0)
    kx, kp = jax.random.split(key)
    x = jax.random.normal(kx, (2, 4, 16, 16), jnp.float32)   # NCHW input
    params = make_params(kp)

    prep = prepare_params(params)        # one-time weight folding, off the per-call path

    fwd = jax.jit(forward)
    out = jax.block_until_ready(fwd(x, prep))
    ref = jax.block_until_ready(jax.jit(reference_forward)(x, params))

    assert out.shape == (2, 16)
    assert bool(jnp.all(jnp.isfinite(out)))
    assert bool(jnp.all((out > 0.0) & (out < 1.0)))          # sigmoid output range
    err = float(jnp.max(jnp.abs(out - ref)))                 # bf16 matmul operands
    assert err < 0.1, err
    print("KERNEL_OK")
</pallas_src>

<mosaic_0001>
module attributes {stable_mosaic.version = 11 : i64} {
  func.func @_fused_forward_kernel(%arg0: memref<32x216xbf16, #tpu.memory_space<vmem>>, %arg1: memref<216x128xbf16, #tpu.memory_space<vmem>>, %arg2: memref<1x128xf32, #tpu.memory_space<vmem>>, %arg3: memref<64x192xbf16, #tpu.memory_space<vmem>>, %arg4: memref<1x64xf32, #tpu.memory_space<vmem>>, %arg5: memref<64x16xbf16, #tpu.memory_space<vmem>>, %arg6: memref<1x16xf32, #tpu.memory_space<vmem>>, %arg7: memref<2x16xf32, #tpu.memory_space<vmem>>) attributes {dimension_semantics = [], scalar_prefetch = 0 : i64, scratch_operands = 0 : i64, tpu.core_type = #tpu.core_type<tc>} {
    %c0 = arith.constant 0 : index
    %c0_0 = arith.constant 0 : index
    %0 = vector.load %arg0[%c0, %c0_0] : memref<32x216xbf16, #tpu.memory_space<vmem>>, vector<32x216xbf16>
    %c0_1 = arith.constant 0 : index
    %c0_2 = arith.constant 0 : index
    %1 = vector.load %arg1[%c0_1, %c0_2] : memref<216x128xbf16, #tpu.memory_space<vmem>>, vector<216x128xbf16>
    %cst = arith.constant dense<0.000000e+00> : vector<32x128xf32>
    %2 = tpu.matmul %0, %1, %cst {dimension_numbers = #tpu.dot_dimension_numbers<[1], [0], [0], [1], [0, 0, 1, 1], [], []>} : vector<32x216xbf16>, vector<216x128xbf16>, vector<32x128xf32> -> vector<32x128xf32>
    %c0_3 = arith.constant 0 : index
    %c0_4 = arith.constant 0 : index
    %3 = vector.load %arg2[%c0_3, %c0_4] : memref<1x128xf32, #tpu.memory_space<vmem>>, vector<1x128xf32>
    %4 = vector.broadcast %3 : vector<1x128xf32> to vector<32x128xf32>
    %5 = arith.addf %2, %4 : vector<32x128xf32>
    %cst_5 = arith.constant 0.000000e+00 : f32
    %6 = vector.broadcast %cst_5 : f32 to vector<32x128xf32>
    %7 = arith.maximumf %5, %6 : vector<32x128xf32>
    %8 = vector.extract_strided_slice %7 {offsets = [0, 0], sizes = [16, 128], strides = [1, 1]} : vector<32x128xf32> to vector<16x128xf32>
    %9 = vector.extract_strided_slice %7 {offsets = [16, 0], sizes = [16, 128], strides = [1, 1]} : vector<32x128xf32> to vector<16x128xf32>
    %10 = arith.maximumf %8, %9 : vector<16x128xf32>
    %c64_i32 = arith.constant 64 : i32
    %11 = tpu.dynamic_rotate %10 by %c64_i32 dim 1 : vector<16x128xf32>, i32 -> vector<16x128xf32>
    %12 = arith.maximumf %10, %11 : vector<16x128xf32>
    %13 = vector.extract_strided_slice %12 {offsets = [0, 0], sizes = [16, 64], strides = [1, 1]} : vector<16x128xf32> to vector<16x64xf32>
    %14 = arith.truncf %13 : vector<16x64xf32> to vector<16x64xbf16>
    %c0_6 = arith.constant 0 : index
    %c0_7 = arith.constant 0 : index
    %15 = vector.load %arg3[%c0_6, %c0_7] : memref<64x192xbf16, #tpu.memory_space<vmem>>, vector<64x192xbf16>
    %cst_8 = arith.constant dense<0.000000e+00> : vector<16x192xf32>
    %16 = tpu.matmul %14, %15, %cst_8 {dimension_numbers = #tpu.dot_dimension_numbers<[1], [0], [0], [1], [0, 0, 1, 1], [], []>} : vector<16x64xbf16>, vector<64x192xbf16>, vector<16x192xf32> -> vector<16x192xf32>
    %17 = vector.extract_strided_slice %16 {offsets = [0, 0], sizes = [16, 64], strides = [1, 1]} : vector<16x192xf32> to vector<16x64xf32>
    %18 = vector.extract_strided_slice %16 {offsets = [0, 64], sizes = [16, 64], strides = [1, 1]} : vector<16x192xf32> to vector<16x64xf32>
    %19 = vector.extract_strided_slice %16 {offsets = [0, 128], sizes = [16, 64], strides = [1, 1]} : vector<16x192xf32> to vector<16x64xf32>
    %cst_9 = arith.constant 0.000000e+00 : f32
    %20 = vector.broadcast %cst_9 : f32 to vector<1x64xf32>
    %21 = vector.extract_strided_slice %17 {offsets = [0, 0], sizes = [15, 64], strides = [1, 1]} : vector<16x64xf32> to vector<15x64xf32>
    %22 = tpu.concatenate %20, %21 in 0 : vector<1x64xf32>, vector<15x64xf32> -> vector<16x64xf32>
    %23 = vector.extract_strided_slice %19 {offsets = [1, 0], sizes = [15, 64], strides = [1, 1]} : vector<16x64xf32> to vector<15x64xf32>
    %24 = tpu.concatenate %23, %20 in 0 : vector<15x64xf32>, vector<1x64xf32> -> vector<16x64xf32>
    %25 = tpu.iota {dimensions = array<i32: 0>} : vector<16x64xi32>
    %c0_i32 = arith.constant 0 : i32
    %26 = vector.broadcast %c0_i32 : i32 to vector<16x64xi32>
    %27 = arith.cmpi eq, %25, %26 : vector<16x64xi32>
    %c8_i32 = arith.constant 8 : i32
    %28 = vector.broadcast %c8_i32 : i32 to vector<16x64xi32>
    %29 = arith.cmpi eq, %25, %28 : vector<16x64xi32>
    %30 = arith.ori %27, %29 : vector<16x64xi1>
    %c7_i32 = arith.constant 7 : i32
    %31 = vector.broadcast %c7_i32 : i32 to vector<16x64xi32>
    %32 = arith.cmpi eq, %25, %31 : vector<16x64xi32>
    %c15_i32 = arith.constant 15 : i32
    %33 = vector.broadcast %c15_i32 : i32 to vector<16x64xi32>
    %34 = arith.cmpi eq, %25, %33 : vector<16x64xi32>
    %35 = arith.ori %32, %34 : vector<16x64xi1>
    %cst_10 = arith.constant 0.000000e+00 : f32
    %36 = vector.broadcast %cst_10 : f32 to vector<16x64xf32>
    %37 = arith.select %30, %36, %22 : vector<16x64xi1>, vector<16x64xf32>
    %38 = arith.addf %37, %18 : vector<16x64xf32>
    %cst_11 = arith.constant 0.000000e+00 : f32
    %39 = vector.broadcast %cst_11 : f32 to vector<16x64xf32>
    %40 = arith.select %35, %39, %24 : vector<16x64xi1>, vector<16x64xf32>
    %41 = arith.addf %38, %40 : vector<16x64xf32>
    %c0_12 = arith.constant 0 : index
    %c0_13 = arith.constant 0 : index
    %42 = vector.load %arg4[%c0_12, %c0_13] : memref<1x64xf32, #tpu.memory_space<vmem>>, vector<1x64xf32>
    %43 = vector.broadcast %42 : vector<1x64xf32> to vector<16x64xf32>
    %44 = arith.addf %41, %43 : vector<16x64xf32>
    %45 = arith.addf %44, %13 : vector<16x64xf32>
    %cst_14 = arith.constant 0.000000e+00 : f32
    %46 = vector.broadcast %cst_14 : f32 to vector<16x64xf32>
    %47 = arith.maximumf %45, %46 : vector<16x64xf32>
    %48 = vector.extract_strided_slice %47 {offsets = [0, 0], sizes = [8, 64], strides = [1, 1]} : vector<16x64xf32> to vector<8x64xf32>
    %cst_15 = arith.constant dense<0.000000e+00> : vector<64xf32>
    %49 = vector.multi_reduction <add>, %48, %cst_15 [0] : vector<8x64xf32> to vector<64xf32>
    %50 = vector.shape_cast %49 : vector<64xf32> to vector<1x64xf32>
    %51 = vector.extract_strided_slice %47 {offsets = [8, 0], sizes = [8, 64], strides = [1, 1]} : vector<16x64xf32> to vector<8x64xf32>
    %cst_16 = arith.constant dense<0.000000e+00> : vector<64xf32>
    %52 = vector.multi_reduction <add>, %51, %cst_16 [0] : vector<8x64xf32> to vector<64xf32>
    %53 = vector.shape_cast %52 : vector<64xf32> to vector<1x64xf32>
    %54 = tpu.concatenate %50, %53 in 0 : vector<1x64xf32>, vector<1x64xf32> -> vector<2x64xf32>
    %55 = arith.truncf %54 : vector<2x64xf32> to vector<2x64xbf16>
    %c0_17 = arith.constant 0 : index
    %c0_18 = arith.constant 0 : index
    %56 = vector.load %arg5[%c0_17, %c0_18] : memref<64x16xbf16, #tpu.memory_space<vmem>>, vector<64x16xbf16>
    %cst_19 = arith.constant dense<0.000000e+00> : vector<2x16xf32>
    %57 = tpu.matmul %55, %56, %cst_19 {dimension_numbers = #tpu.dot_dimension_numbers<[1], [0], [0], [1], [0, 0, 1, 1], [], []>} : vector<2x64xbf16>, vector<64x16xbf16>, vector<2x16xf32> -> vector<2x16xf32>
    %c0_20 = arith.constant 0 : index
    %c0_21 = arith.constant 0 : index
    %58 = vector.load %arg6[%c0_20, %c0_21] : memref<1x16xf32, #tpu.memory_space<vmem>>, vector<1x16xf32>
    %59 = vector.broadcast %58 : vector<1x16xf32> to vector<2x16xf32>
    %60 = arith.addf %57, %59 : vector<2x16xf32>
    %61 = arith.negf %60 : vector<2x16xf32>
    %62 = math.exp %61 : vector<2x16xf32>
    %cst_22 = arith.constant 1.000000e+00 : f32
    %63 = vector.broadcast %cst_22 : f32 to vector<2x16xf32>
    %64 = arith.addf %63, %62 : vector<2x16xf32>
    %65 = arith.divf %63, %64 : vector<2x16xf32>
    %c0_23 = arith.constant 0 : index
    %c0_24 = arith.constant 0 : index
    %66 = vector.load %arg7[%c0_23, %c0_24] : memref<2x16xf32, #tpu.memory_space<vmem>>, vector<2x16xf32>
    tpu.vector_store %arg7[%c0_23, %c0_24], %65 {strides = array<i32>} : memref<2x16xf32, #tpu.memory_space<vmem>>, vector<2x16xf32>,
    return
  }
}

</mosaic_0001>

<llo_original>
// kernel: forward.1
$region0: #{forward.1}
  #allocation0 [shape = 'u32[]', space=smem, size = 0x4, offset = 0x4, fixed_abs, tag = 'smem constant byte address 0x4 - core index']
  #allocation1 [shape = 'u32[144,128]{1,0:T(1,128)}', space=vmem, size = 0x12000, scoped, tag = 'internal scratch']
  %s0 = inlined_call_operand.vmem [shape: bf16[32,216], index: 0, kind: input, shape index: {}]
  %s1 = inlined_call_operand.vmem [shape: bf16[216,128], index: 1, kind: input, shape index: {}]
  %s2 = inlined_call_operand.vmem [shape: f32[1,128], index: 2, kind: input, shape index: {}]
  %s3 = inlined_call_operand.vmem [shape: bf16[64,192], index: 3, kind: input, shape index: {}]
  %s4 = inlined_call_operand.vmem [shape: f32[1,64], index: 4, kind: input, shape index: {}]
  %s5 = inlined_call_operand.vmem [shape: bf16[64,16], index: 5, kind: input, shape index: {}]
  %s6 = inlined_call_operand.vmem [shape: f32[1,16], index: 6, kind: input, shape index: {}]
  %s7 = inlined_call_operand.hbm [shape: f32[2,16], index: 7, kind: output, shape index: {}]
  %s8 = sld [smem:[#allocation0]]
  $region38: #{forward.1} parent=0
    _
  %s10 = ssub.s32 1, %s8
  %s11 = scalar_select 0, %s10, %s8
  $region1: #{forward.1} parent=0
    #allocation2 [shape = 'u8[1024]{0}', space=vmem, size = 0x400, scoped, tag = 'output window, operand 0, single buffered']
    #allocation3 [shape = 's32[1]{0}', space=sflag, size = 0x4, scoped, tag = 'scoped memory for forward.1']
    %12 = vsyncpa [#allocation3], 0
    // Predicated region
    $region2: #{forward.1} parent=1 // pred_check
      _
    $region3: #{forward.1} parent=1 // pred_check_branch
      %14 = sbr.rel (0) target = $region5
    $region4: #{forward.1} parent=1 // pred_region
      _
    $region5: #{forward.1} parent=1 // pred_fallthru
      _
    // Predicated region
    $region6: #{forward.1} parent=1 // pred_check
      _
    $region7: #{forward.1} parent=1 // pred_check_branch
      %16 = sbr.rel (0) target = $region9
    $region8: #{forward.1} parent=1 // pred_region
      _
    $region9: #{forward.1} parent=1 // pred_fallthru
      _
    // Predicated region
    $region10: #{forward.1} parent=1 // pred_check
      _
    $region11: #{forward.1} parent=1 // pred_check_branch
      %18 = sbr.rel (0) target = $region13
    $region12: #{forward.1} parent=1 // pred_region
      _
    $region13: #{forward.1} parent=1 // pred_fallthru
      _
    // Predicated region
    $region14: #{forward.1} parent=1 // pred_check
      _
    $region15: #{forward.1} parent=1 // pred_check_branch
      %20 = sbr.rel (0) target = $region17
    $region16: #{forward.1} parent=1 // pred_region
      _
    $region17: #{forward.1} parent=1 // pred_fallthru
      _
    // Predicated region
    $region18: #{forward.1} parent=1 // pred_check
      _
    $region19: #{forward.1} parent=1 // pred_check_branch
      %22 = sbr.rel (0) target = $region21
    $region20: #{forward.1} parent=1 // pred_region
      _
    $region21: #{forward.1} parent=1 // pred_fallthru
      _
    // Predicated region
    $region22: #{forward.1} parent=1 // pred_check
      _
    $region23: #{forward.1} parent=1 // pred_check_branch
      %24 = sbr.rel (0) target = $region25
    $region24: #{forward.1} parent=1 // pred_region
      _
    $region25: #{forward.1} parent=1 // pred_fallthru
      _
    // Predicated region
    $region26: #{forward.1} parent=1 // pred_check
      _
    $region27: #{forward.1} parent=1 // pred_check_branch
      %26 = sbr.rel (0) target = $region29
    $region28: #{forward.1} parent=1 // pred_region
      _
    $region29: #{forward.1} parent=1 // pred_fallthru
      _
    %v28 = vld [vmem:[%s0] sm:$0xff]
    %v29 = vld [vmem:[%s0 + $0x8] sm:$0xff]
    %v30 = vld [vmem:[%s0 + $0x10] sm:$0xff]
    %v31 = vld [vmem:[%s0 + $0x18] sm:$0xff]
    %v32 = vld [vmem:[%s1] sm:$0xf]
    %v33 = vld [vmem:[%s1 + $0x4] sm:$0xf]
    %v34 = vld [vmem:[%s1 + $0x8] sm:$0xf]
    %v35 = vld [vmem:[%s1 + $0xc] sm:$0xf]
    %v36 = vld [vmem:[%s1 + $0x10] sm:$0xf]
    %v37 = vld [vmem:[%s1 + $0x14] sm:$0xf]
    %v38 = vld [vmem:[%s1 + $0x18] sm:$0xf]
    %v39 = vld [vmem:[%s1 + $0x1c] sm:$0xf]
    %v40 = vld [vmem:[%s1 + $0x20] sm:$0xf]
    %v41 = vld [vmem:[%s1 + $0x24] sm:$0xf]
    %v42 = vld [vmem:[%s1 + $0x28] sm:$0xf]
    %v43 = vld [vmem:[%s1 + $0x2c] sm:$0xf]
    %v44 = vld [vmem:[%s1 + $0x30] sm:$0xf]
    %v45 = vld [vmem:[%s1 + $0x34] sm:$0xf]
    %v46 = vld [vmem:[%s1 + $0x38] sm:$0xf]
    %v47 = vld [vmem:[%s1 + $0x3c] sm:$0xf]
    %v48 = vld [vmem:[%s1 + $0x40] sm:$0xf]
    %v49 = vld [vmem:[%s1 + $0x44] sm:$0xf]
    %v50 = vld [vmem:[%s1 + $0x48] sm:$0xf]
    %v51 = vld [vmem:[%s1 + $0x4c] sm:$0xf]
    %v52 = vld [vmem:[%s1 + $0x50] sm:$0xf]
    %v53 = vld [vmem:[%s1 + $0x54] sm:$0xf]
    %v54 = vld [vmem:[%s1 + $0x58] sm:$0xf]
    %v55 = vld [vmem:[%s1 + $0x5c] sm:$0xf]
    %v56 = vld [vmem:[%s1 + $0x60] sm:$0xf]
    %v57 = vld [vmem:[%s1 + $0x64] sm:$0xf]
    %v58 = vld [vmem:[%s1 + $0x68] sm:$0xf]
    %v59 = vld [vmem:[%s2] sm:$0x1]
    %v61 = vlaneseq
    %v62 = vshrl.u32 %v61, 7
    %v63 = vsub.s32 0, %v62
    %v64 = vrot.slane %v59, %v63
    %v70 = vunpack.c.l.b16 %v28
    %v71 = vunpack.c.h.b16 %v28
    %v72 = vunpack.c.l.b16 %v29
    %v73 = vunpack.c.h.b16 %v29
    %v74 = vunpack.c.l.b16 %v30
    %v75 = vunpack.c.h.b16 %v30
    %v76 = vunpack.c.l.b16 %v31
    %v77 = vunpack.c.h.b16 %v31
    %v78 = vpack.c.b16 %v72, %v70
    %v79 = vpack.c.b16 %v73, %v71
    %v80 = vpack.c.b16 %v76, %v74
    %v81 = vpack.c.b16 %v77, %v75
    %v111 = vunpack.c.l.b16 %v32
    %v112 = vunpack.c.l.b16 %v33
    %v113 = vunpack.c.l.b16 %v34
    %v114 = vunpack.c.l.b16 %v35
    %v115 = vunpack.c.l.b16 %v36
    %v116 = vunpack.c.l.b16 %v37
    %v117 = vunpack.c.l.b16 %v38
    %v118 = vunpack.c.l.b16 %v39
    %v119 = vunpack.c.l.b16 %v40
    %v120 = vunpack.c.l.b16 %v41
    %v121 = vunpack.c.l.b16 %v42
    %v122 = vunpack.c.l.b16 %v43
    %v123 = vunpack.c.l.b16 %v44
    %v124 = vunpack.c.l.b16 %v45
    %v125 = vunpack.c.l.b16 %v46
    %v126 = vunpack.c.l.b16 %v47
    %v127 = vunpack.c.l.b16 %v48
    %v128 = vunpack.c.l.b16 %v49
    %v129 = vunpack.c.l.b16 %v50
    %v130 = vunpack.c.l.b16 %v51
    %v131 = vunpack.c.l.b16 %v52
    %v132 = vunpack.c.l.b16 %v53
    %v133 = vunpack.c.l.b16 %v54
    %v134 = vunpack.c.l.b16 %v55
    %v135 = vunpack.c.l.b16 %v56
    %v136 = vunpack.c.l.b16 %v57
    %v137 = vunpack.c.l.b16 %v58
    %v138 = vpack.c.b16 %v112, %v111
    %v139 = vpack.c.b16 %v114, %v113
    %v140 = vpack.c.b16 %v116, %v115
    %v141 = vpack.c.b16 %v118, %v117
    %v142 = vpack.c.b16 %v120, %v119
    %v143 = vpack.c.b16 %v122, %v121
    %v144 = vpack.c.b16 %v124, %v123
    %v145 = vpack.c.b16 %v126, %v125
    %v146 = vpack.c.b16 %v128, %v127
    %v147 = vpack.c.b16 %v130, %v129
    %v148 = vpack.c.b16 %v132, %v131
    %v149 = vpack.c.b16 %v134, %v133
    %v150 = vpack.c.b16 %v136, %v135
    %v151 = vpack.c.b16 %v137, %v137
    %vm165 = vcmask 719872
    %v167 = vsel %vm165, %v79, 0
    %v170 = vsel %vm165, %v81, 0
    %vm172 = vcmask 1043456
    %v174 = vsel %vm172, %v151, 0
    %176 = vmatprep.subr.bf16.mxu0 0
    %177 = vmatpush1.bf16.msra.mxu0 %v145
    %178 = vmatprep.subr.bf16.mxu0 0
    %179 = vmatpush1.bf16.msra.mxu0 %v144
    %180 = vmatprep.subr.bf16.mxu0 0
    %181 = vmatpush1.bf16.msra.mxu0 %v143
    %182 = vmatprep.subr.bf16.mxu0 0
    %183 = vmatpush1.bf16.msra.mxu0 %v142
    %184 = vmatprep.subr.bf16.mxu0 0
    %185 = vmatpush1.bf16.msra.mxu0 %v141
    %186 = vmatprep.subr.bf16.mxu0 0
    %187 = vmatpush1.bf16.msra.mxu0 %v140
    %188 = vmatprep.subr.bf16.mxu0 0
    %189 = vmatpush1.bf16.msra.mxu0 %v139
    %190 = vmatprep.subr.bf16.mxu0 0
    %191 = vmatpush1.bf16.msra.mxu0 %v138
    %192 = vmatprep.subr.bf16.mxu0 0
    %193 = vmatpush2.bf16.msra.mxu0 0
    %194 = vmatprep.subr.bf16.mxu0 0
    %195 = vmatpush2.bf16.msra.mxu0 0
    %196 = vmatprep.subr.bf16.mxu0 0
    %197 = vmatpush2.bf16.msra.mxu0 %v174
    %198 = vmatprep.subr.bf16.mxu0 0
    %199 = vmatpush2.bf16.msra.mxu0 %v150
    %200 = vmatprep.subr.bf16.mxu0 0
    %201 = vmatpush2.bf16.msra.mxu0 %v149
    %202 = vmatprep.subr.bf16.mxu0 0
    %203 = vmatpush2.bf16.msra.mxu0 %v148
    %204 = vmatprep.subr.bf16.mxu0 0
    %205 = vmatpush2.bf16.msra.mxu0 %v147
    %206 = vmatprep.subr.bf16.mxu0 0
    %207 = vmatpush2.bf16.msra.mxu0 %v146
    %208 = vmatprep.mubr.bf16.mxu0 %v167
    %209 = vmatmul.mubr.bf16.gmra.mxu0 %v78
    %v210 = vpop.f32.mrf.mxu0
    %v211 = vadd.f32 %v64, %v210
    %v212 = vpop.f32.mrf.mxu0
    %v213 = vpop.f32.mrf.mxu0
    %v214 = vadd.f32 %v64, %v213
    %v215 = vpop.f32.mrf.mxu0
    %216 = vmatprep.mubr.bf16.mxu0 %v170
    %217 = vmatmul.mubr.bf16.gmra.mxu0 %v80
    %v218 = vpop.f32.mrf.mxu0
    %v219 = vadd.f32 %v64, %v218
    %v220 = vpop.f32.mrf.mxu0
    %v221 = vpop.f32.mrf.mxu0
    %v222 = vadd.f32 %v64, %v221
    %v223 = vpop.f32.mrf.mxu0
    %224 = vdwg.mxu0
    %v225 = vmax.f32 %v211, 0.0
    %v226 = vmax.f32 %v214, 0.0
    %v227 = vmax.f32 %v219, 0.0
    %v228 = vmax.f32 %v222, 0.0
    %v229 = vmax.f32 %v225, %v227
    %v230 = vmax.f32 %v226, %v228
    %231 = vrot.lane.b32.xlu0 %v229, 64
    %v232 = vpop.permute.xlu0 %231
    %233 = vrot.lane.b32.xlu0 %v230, 64
    %v234 = vpop.permute.xlu0 %233
    %v235 = vmax.f32 %v229, %v232
    %v236 = vmax.f32 %v230, %v234
    %v237 = vpack.c.bf16 %v236, %v235
    %v238 = vld [vmem:[%s3] sm:$0xff]
    %v239 = vld [vmem:[%s3 + $0x8] sm:$0xff]
    %v240 = vld [vmem:[%s3 + $0x10] sm:$0xff]
    %v241 = vld [vmem:[%s3 + $0x18] sm:$0xff]
    %v242 = vld [vmem:[%s3 + $0x20] sm:$0xff]
    %v243 = vld [vmem:[%s3 + $0x28] sm:$0xff]
    %v244 = vld [vmem:[%s3 + $0x30] sm:$0xff]
    %v245 = vld [vmem:[%s3 + $0x38] sm:$0xff]
    %v254 = vunpack.c.l.b16 %v238
    %v255 = vunpack.c.h.b16 %v238
    %v256 = vunpack.c.l.b16 %v239
    %v257 = vunpack.c.h.b16 %v239
    %v258 = vunpack.c.l.b16 %v240
    %v259 = vunpack.c.h.b16 %v240
    %v260 = vunpack.c.l.b16 %v241
    %v261 = vunpack.c.h.b16 %v241
    %v262 = vunpack.c.l.b16 %v242
    %v263 = vunpack.c.h.b16 %v242
    %v264 = vunpack.c.l.b16 %v243
    %v265 = vunpack.c.h.b16 %v243
    %v266 = vunpack.c.l.b16 %v244
    %v267 = vunpack.c.h.b16 %v244
    %v268 = vunpack.c.l.b16 %v245
    %v269 = vunpack.c.h.b16 %v245
    %v270 = vpack.c.b16 %v256, %v254
    %v271 = vpack.c.b16 %v257, %v255
    %v272 = vpack.c.b16 %v260, %v258
    %v273 = vpack.c.b16 %v261, %v259
    %v274 = vpack.c.b16 %v264, %v262
    %v275 = vpack.c.b16 %v265, %v263
    %v276 = vpack.c.b16 %v268, %v266
    %v277 = vpack.c.b16 %v269, %v267
    %vm286 = vcmask 523264
    %v288 = vsel %vm286, %v237, 0
    %290 = vmatprep.subr.bf16.mxu0 0
    %291 = vmatpush1.bf16.msra.mxu0 0
    %292 = vmatprep.subr.bf16.mxu0 0
    %293 = vmatpush1.bf16.msra.mxu0 0
    %294 = vmatprep.subr.bf16.mxu0 0
    %295 = vmatpush1.bf16.msra.mxu0 0
    %296 = vmatprep.subr.bf16.mxu0 0
    %297 = vmatpush1.bf16.msra.mxu0 0
    %298 = vmatprep.subr.bf16.mxu0 %v277
    %299 = vmatpush1.bf16.msra.mxu0 %v276
    %300 = vmatprep.subr.bf16.mxu0 %v275
    %301 = vmatpush1.bf16.msra.mxu0 %v274
    %302 = vmatprep.subr.bf16.mxu0 %v273
    %303 = vmatpush1.bf16.msra.mxu0 %v272
    %304 = vmatprep.subr.bf16.mxu0 %v271
    %305 = vmatpush1.bf16.msra.mxu0 %v270
    %306 = vmatprep.subr.bf16.mxu0 0
    %307 = vmatpush2.bf16.msra.mxu0 0
    %308 = vmatprep.subr.bf16.mxu0 0
    %309 = vmatpush2.bf16.msra.mxu0 0
    %310 = vmatprep.subr.bf16.mxu0 0
    %311 = vmatpush2.bf16.msra.mxu0 0
    %312 = vmatprep.subr.bf16.mxu0 0
    %313 = vmatpush2.bf16.msra.mxu0 0
    %314 = vmatprep.subr.bf16.mxu0 0
    %315 = vmatpush2.bf16.msra.mxu0 0
    %316 = vmatprep.subr.bf16.mxu0 0
    %317 = vmatpush2.bf16.msra.mxu0 0
    %318 = vmatprep.subr.bf16.mxu0 0
    %319 = vmatpush2.bf16.msra.mxu0 0
    %320 = vmatprep.subr.bf16.mxu0 0
    %321 = vmatpush2.bf16.msra.mxu0 0
    %322 = vmatprep.mubr.bf16.mxu0 0
    %323 = vmatmul.mubr.bf16.gmra.mxu0 %v288
    %v324 = vpop.f32.mrf.mxu0
    %v325 = vadd.f32 0.0, %v324
    %v326 = vpop.f32.mrf.mxu0
    %v327 = vadd.f32 0.0, %v326
    %v328 = vpop.f32.mrf.mxu0
    %v329 = vadd.f32 0.0, %v328
    %v330 = vpop.f32.mrf.mxu0
    %v331 = vadd.f32 0.0, %v330
    %332 = vdwg.mxu0
    %vm335 = vcmask 1040384
    %v336 = vrot.slane %v325, 7
    %v337 = vrot.slane %v329, 7
    %v338 = vsel %vm335, %v336, %v337
    %v341 = vsel %vm335, 0.0, %v336
    %vm344 = vcmask 1046528
    %v345 = vrot.slane %v327, 1
    %v346 = vrot.slane %v331, 1
    %v347 = vsel %vm344, %v345, %v346
    %v350 = vsel %vm344, %v346, 0.0
    %v351 = vlaneseq
    %v352 = vshrl.u32 %v351, 7
    %v353 = vadd.s32 %v352, 8
    %vm354 = vcmp.eq.s32.totalorder %v352, 0
    %vm355 = vcmp.eq.s32.totalorder %v353, 0
    %vm356 = vcmp.eq.s32.totalorder %v352, 8
    %vm357 = vcmp.eq.s32.totalorder %v353, 8
    %vm358 = vmor %vm354, %vm356
    %vm359 = vmor %vm355, %vm357
    %vm360 = vcmp.eq.s32.totalorder %v352, 7
    %vm361 = vcmp.eq.s32.totalorder %v353, 7
    %vm362 = vcmp.eq.s32.totalorder %v352, 15
    %vm363 = vcmp.eq.s32.totalorder %v353, 15
    %vm364 = vmor %vm360, %vm362
    %vm365 = vmor %vm361, %vm363
    %v366 = vsel %vm358, 0.0, %v341
    %v367 = vsel %vm359, 0.0, %v338
    %368 = vrot.lane.b32.xlu0 %v325, 64
    %v369 = vpop.permute.xlu0 %368
    %370 = vrot.lane.b32.xlu0 %v329, 64
    %v371 = vpop.permute.xlu0 %370
    %v374 = vadd.f32 %v366, %v369
    %v375 = vadd.f32 %v367, %v371
    %v376 = vsel %vm364, 0.0, %v347
    %v377 = vsel %vm365, 0.0, %v350
    %v378 = vadd.f32 %v374, %v376
    %v379 = vadd.f32 %v375, %v377
    %v380 = vld [vmem:[%s4] sm:$0x1]
    %v382 = vlaneseq
    %v383 = vshrl.u32 %v382, 7
    %v384 = vsub.s32 0, %v383
    %v385 = vrot.slane %v380, %v384
    %v387 = vadd.f32 %v378, %v385
    %v388 = vadd.f32 %v379, %v385
    %v389 = vadd.f32 %v387, %v235
    %v390 = vadd.f32 %v388, %v236
    %v391 = vmax.f32 %v389, 0.0
    %v392 = vmax.f32 %v390, 0.0
    %v393 = vsel %vm286, %v391, 0.0
    %v394 = vrot.slane %v393, 4
    %v395 = vadd.f32 %v393, %v394
    %v396 = vrot.slane %v395, 2
    %v397 = vadd.f32 %v395, %v396
    %v398 = vrot.slane %v397, 1
    %v399 = vadd.f32 %v397, %v398
    %v400 = vsel %vm286, %v392, 0.0
    %v401 = vrot.slane %v400, 4
    %v402 = vadd.f32 %v400, %v401
    %v403 = vrot.slane %v402, 2
    %v404 = vadd.f32 %v402, %v403
    %v405 = vrot.slane %v404, 1
    %v406 = vadd.f32 %v404, %v405
    %v407 = vsel %vm335, %v399, %v406
    %v408 = vpack.c.bf16 %v407, %v407
    %v409 = vld [vmem:[%s5] sm:$0xf]
    %v410 = vld [vmem:[%s5 + $0x4] sm:$0xf]
    %v411 = vld [vmem:[%s5 + $0x8] sm:$0xf]
    %v412 = vld [vmem:[%s5 + $0xc] sm:$0xf]
    %v413 = vld [vmem:[%s5 + $0x10] sm:$0xf]
    %v414 = vld [vmem:[%s5 + $0x14] sm:$0xf]
    %v415 = vld [vmem:[%s5 + $0x18] sm:$0xf]
    %v416 = vld [vmem:[%s5 + $0x1c] sm:$0xf]
    %v417 = vld [vmem:[%s6] sm:$0x1]
    %v419 = vlaneseq
    %v420 = vshrl.u32 %v419, 7
    %v421 = vsub.s32 0, %v420
    %v422 = vrot.slane %v417, %v421
    %v432 = vunpack.c.l.b16 %v409
    %v433 = vunpack.c.l.b16 %v410
    %v434 = vunpack.c.l.b16 %v411
    %v435 = vunpack.c.l.b16 %v412
    %v436 = vunpack.c.l.b16 %v413
    %v437 = vunpack.c.l.b16 %v414
    %v438 = vunpack.c.l.b16 %v415
    %v439 = vunpack.c.l.b16 %v416
    %v440 = vpack.c.b16 %v433, %v432
    %v441 = vpack.c.b16 %v435, %v434
    %v442 = vpack.c.b16 %v437, %v436
    %v443 = vpack.c.b16 %v439, %v438
    %v449 = vsel %vm286, %v408, 0
    %451 = vmatprep.subr.bf16.mxu0 0
    %452 = vmatpush1.bf16.msra.mxu0 0
    %453 = vmatprep.subr.bf16.mxu0 0
    %454 = vmatpush1.bf16.msra.mxu0 0
    %455 = vmatprep.subr.bf16.mxu0 0
    %456 = vmatpush1.bf16.msra.mxu0 0
    %457 = vmatprep.subr.bf16.mxu0 0
    %458 = vmatpush1.bf16.msra.mxu0 0
    %459 = vmatprep.subr.bf16.mxu0 0
    %460 = vmatpush1.bf16.msra.mxu0 %v443
    %461 = vmatprep.subr.bf16.mxu0 0
    %462 = vmatpush1.bf16.msra.mxu0 %v442
    %463 = vmatprep.subr.bf16.mxu0 0
    %464 = vmatpush1.bf16.msra.mxu0 %v441
    %465 = vmatprep.subr.bf16.mxu0 0
    %466 = vmatpush1.bf16.msra.mxu0 %v440
    %467 = vmatprep.subr.bf16.mxu0 0
    %468 = vmatpush2.bf16.msra.mxu0 0
    %469 = vmatprep.subr.bf16.mxu0 0
    %470 = vmatpush2.bf16.msra.mxu0 0
    %471 = vmatprep.subr.bf16.mxu0 0
    %472 = vmatpush2.bf16.msra.mxu0 0
    %473 = vmatprep.subr.bf16.mxu0 0
    %474 = vmatpush2.bf16.msra.mxu0 0
    %475 = vmatprep.subr.bf16.mxu0 0
    %476 = vmatpush2.bf16.msra.mxu0 0
    %477 = vmatprep.subr.bf16.mxu0 0
    %478 = vmatpush2.bf16.msra.mxu0 0
    %479 = vmatprep.subr.bf16.mxu0 0
    %480 = vmatpush2.bf16.msra.mxu0 0
    %481 = vmatprep.subr.bf16.mxu0 0
    %482 = vmatpush2.bf16.msra.mxu0 0
    %483 = vmatprep.mubr.bf16.mxu0 0
    %484 = vmatmul.mubr.bf16.gmra.mxu0 %v449
    %v485 = vpop.f32.mrf.mxu0
    %v486 = vadd.f32 %v422, %v485
    %v487 = vpop.f32.mrf.mxu0
    %v488 = vpop.f32.mrf.mxu0
    %v489 = vpop.f32.mrf.mxu0
    %490 = vdwg.mxu0
    %v491 = vxor.u32 %v486, 2147483648
    %v492 = vmul.f32 %v491, 1.442695
    %v493 = vpow.pop %v492
    %v494 = vadd.f32 %v493, 1.0
    %v495 = vrcp.pop %v494
    %v496 = vmul.f32 1.0, %v495
    %vm497 = vcmask 123904
    %498 = vst.msk [vmem:[#allocation2] sm:$0x3] %vm497, %v496
    // Predicated region
    $region30: #{forward.1} parent=1 // pred_check
      _
    $region31: #{forward.1} parent=1 // pred_check_branch
      %500 = sbr.rel (0) target = $region33
    $region32: #{forward.1} parent=1 // pred_region
      %s502 = ssub.s32 32, 32
      %503 = vsyncadd [#allocation3], %s502
      %s505 = sshll.u32 [#allocation2], 4
      %s506 = int_to_ptr.vmem [resolvable:$true] %s505
      %508 = dma.vmem_to_hbm [thread:$0]  %s506, 32, %s7, [#allocation3]
    $region33: #{forward.1} parent=1 // pred_fallthru
      _
    // Predicated region
    $region34: #{forward.1} parent=1 // pred_check
      _
    $region35: #{forward.1} parent=1 // pred_check_branch
      %510 = sbr.rel (0) target = $region37
    $region36: #{forward.1} parent=1 // pred_region
      %511 = dma.done [#allocation3], 32
    $region37: #{forward.1} parent=1 // pred_fallthru
      _
    %512 = vsyncpa [#allocation3], 1

</llo_original>
